<compile_context>
chip_gen: v6e
topology: v6e:2x2x1
jax: 0.10.0
libtpu: 0.0.40
codegen_flags: <defaults>
</compile_context>

<pallas_src>
import functools

import jax
import jax.numpy as jnp
from jax.experimental import pallas as pl
from jax.experimental.pallas import tpu as pltpu

_LANES = 128

# ~4 MiB per block buffer: in+out, double-buffered => ~16 MiB of VMEM.
# Combined with the explicit 32 MiB scoped-VMEM limit below this is safe on
# v5e / v6e / v7x while amortizing the ~0.35 us per-grid-step overhead.
_TARGET_BLOCK_BYTES = 4 * 1024 * 1024
_VMEM_LIMIT_BYTES = 32 * 1024 * 1024


def _sublanes_for(dtype) -> int:
    """Native sublane tile height for a dtype (8 / 16 / 32)."""
    itemsize = jnp.dtype(dtype).itemsize
    return {4: 8, 2: 16, 1: 32}.get(itemsize, 8)


def _lambda_kernel(f, x_ref, o_ref):
    # Apply the wrapped callable to the whole VMEM tile (elementwise).
    o_ref[...] = f(x_ref[...]).astype(o_ref.dtype)


def _choose_layout(n_main, in_itemsize, out_itemsize, sub):
    """Pick a lane-dense (rows, width) slab and rows-per-grid-step."""
    # Widest last dim (multiple of 128) dividing n_main that still leaves at
    # least one native sublane tile worth of rows.
    width = _LANES
    for w in (2048, 1024, 512, 256, 128):
        if n_main % w == 0 and (n_main // w) >= sub:
            width = w
            break
    rows = n_main // width

    # Rows per grid step: multiple of the native sublane tile, sized to hit
    # the target block bytes for the wider of the in/out dtypes.
    per_row_bytes = width * max(in_itemsize, out_itemsize)
    tile_rows = _TARGET_BLOCK_BYTES // per_row_bytes
    tile_rows = max(sub, (tile_rows // sub) * sub)

    if rows >= 2 * sub:
        # Guarantee >= 2 grid steps so dimension_semantics=("parallel",)
        # actually shards across both TensorCores on v7x.
        half = ((pl.cdiv(rows, 2) + sub - 1) // sub) * sub
        tile_rows = min(tile_rows, half)
    else:
        tile_rows = min(tile_rows, max(sub, ((rows + sub - 1) // sub) * sub))
    return rows, width, tile_rows


def pallas_lambda(f, x, donate=False):
    """Apply an *elementwise*, shape-preserving callable `f` via Pallas."""
    orig_shape = x.shape
    in_dtype = x.dtype
    n = x.size

    # Enforce the shape-preserving contract (elementwise-ness is documented,
    # not checkable cheaply).  Output dtype follows f (may differ from input).
    out_aval = jax.eval_shape(f, jax.ShapeDtypeStruct(orig_shape, in_dtype))
    if out_aval.shape != orig_shape:
        raise ValueError(
            "pallas_lambda only supports shape-preserving elementwise "
            f"callables; f maps {orig_shape} -> {out_aval.shape}"
        )
    out_dtype = out_aval.dtype

    in_itemsize = jnp.dtype(in_dtype).itemsize
    out_itemsize = jnp.dtype(out_dtype).itemsize
    sub = max(_sublanes_for(in_dtype), _sublanes_for(out_dtype))
    min_elems = sub * _LANES

    # Tiny inputs (< one native tile): plain XLA is cheaper than a kernel
    # launch.  TODO(synk): plain-JAX fallback, not a Pallas kernel.
    if n < min_elems:
        return f(x)

    x_flat = jnp.ravel(x)
    n_tail = n % _LANES          # ragged tail, handled outside the kernel
    n_main = n - n_tail          # >= min_elems, multiple of 128

    rows, width, tile_rows = _choose_layout(n_main, in_itemsize, out_itemsize, sub)
    x_main = x_flat if n_tail == 0 else x_flat[:n_main]
    x2d = x_main.reshape(rows, width)

    num_blocks = pl.cdiv(rows, tile_rows)

    # Advisory cost estimate so XLA can overlap neighbors around this call.
    bytes_accessed = n * (in_itemsize + out_itemsize)
    try:
        blk_cost = pl.estimate_cost(f, jax.ShapeDtypeStruct((rows, width), in_dtype))
        cost = pl.CostEstimate(
            flops=int(blk_cost.flops),
            transcendentals=int(blk_cost.transcendentals),
            bytes_accessed=bytes_accessed,
        )
    except Exception:  # pragma: no cover - estimate is best-effort only
        cost = pl.CostEstimate(flops=n, transcendentals=0,
                               bytes_accessed=bytes_accessed)

    io_aliases = {}
    if donate and in_dtype == out_dtype and n_tail == 0:
        io_aliases = {0: 0}

    out2d = pl.pallas_call(
        functools.partial(_lambda_kernel, f),
        out_shape=jax.ShapeDtypeStruct((rows, width), out_dtype),
        grid=(num_blocks,),
        in_specs=[pl.BlockSpec((tile_rows, width), lambda i: (i, 0))],
        out_specs=pl.BlockSpec((tile_rows, width), lambda i: (i, 0)),
        compiler_params=pltpu.CompilerParams(
            dimension_semantics=("parallel",),
            vmem_limit_bytes=_VMEM_LIMIT_BYTES,
        ),
        cost_estimate=cost,
        input_output_aliases=io_aliases,
    )(x2d)

    out_flat = out2d.reshape(-1)
    if n_tail:
        # <128-element tail computed in plain XLA; one concat copy (still far
        # cheaper than the old pad + slice double round-trip over HBM).
        out_tail = f(x_flat[n_main:]).astype(out_dtype)
        out_flat = jnp.concatenate([out_flat, out_tail.reshape(-1)])
    return out_flat.reshape(orig_shape)


class LambdaPallas:
    """JAX/Pallas analogue of the PyTorch Lambda module (elementwise f)."""

    def __init__(self, f):
        self.f = f

    def __call__(self, x):
        return pallas_lambda(self.f, x)


if __name__ == "__main__":
    key = jax.random.PRNGKey(0)
    x = jax.random.normal(key, (2, 4, 16, 16), dtype=jnp.float32)

    # Concrete Lambda instance: SiLU, f(x) = x * sigmoid(x)
    f = lambda t: t * jax.nn.sigmoid(t)
    mod = LambdaPallas(f)

    out = mod(x)
    out = jax.block_until_ready(out)

    # Sanity check against plain-JAX reference.
    ref = f(x)
    assert out.shape == x.shape and out.dtype == ref.dtype
    assert jnp.allclose(out, ref, atol=1e-6, rtol=1e-6)

    print("KERNEL_OK")
</pallas_src>

<mosaic_0001>
module attributes {stable_mosaic.version = 11 : i64} {
  func.func @_lambda_kernel(%arg0: i32, %arg1: memref<8x256xf32, #tpu.memory_space<vmem>>, %arg2: memref<8x256xf32, #tpu.memory_space<vmem>>) attributes {dimension_semantics = [#tpu.dimension_semantics<parallel>], iteration_bounds = array<i64: 1>, scalar_prefetch = 0 : i64, scratch_operands = 0 : i64, tpu.core_type = #tpu.core_type<tc>, window_params = [{transform_indices = @transform_0, window_bounds = array<i64: 8, 256>}, {transform_indices = @transform_1, window_bounds = array<i64: 8, 256>}]} {
    %c0 = arith.constant 0 : index
    %c0_0 = arith.constant 0 : index
    %0 = vector.load %arg1[%c0, %c0_0] : memref<8x256xf32, #tpu.memory_space<vmem>>, vector<8x256xf32>
    %1 = arith.negf %0 : vector<8x256xf32>
    %2 = math.exp %1 : vector<8x256xf32>
    %cst = arith.constant 1.000000e+00 : f32
    %3 = vector.broadcast %cst : f32 to vector<8x256xf32>
    %4 = arith.addf %3, %2 : vector<8x256xf32>
    %5 = arith.divf %3, %4 : vector<8x256xf32>
    %6 = arith.mulf %0, %5 : vector<8x256xf32>
    %c0_1 = arith.constant 0 : index
    %c0_2 = arith.constant 0 : index
    %7 = vector.load %arg2[%c0_1, %c0_2] : memref<8x256xf32, #tpu.memory_space<vmem>>, vector<8x256xf32>
    tpu.vector_store %arg2[%c0_1, %c0_2], %6 {strides = array<i32>} : memref<8x256xf32, #tpu.memory_space<vmem>>, vector<8x256xf32>,
    return
  }
  func.func @transform_0(%arg0: i32) -> (i32, i32) {
    %c0_i32 = arith.constant 0 : i32
    %c0_i32_0 = arith.constant 0 : i32
    return %arg0, %c0_i32 : i32, i32
  }
  func.func @transform_1(%arg0: i32) -> (i32, i32) {
    %c0_i32 = arith.constant 0 : i32
    %c0_i32_0 = arith.constant 0 : i32
    return %arg0, %c0_i32 : i32, i32
  }
}

</mosaic_0001>

<llo_original>
// kernel: tpu_custom_call.1
$region0: #{tpu_custom_call.1}
  #allocation0 [shape = 'u32[]', space=smem, size = 0x4, offset = 0x4, fixed_abs, tag = 'smem constant byte address 0x4 - core index']
  #allocation1 [shape = 'u32[144,128]{1,0:T(1,128)}', space=vmem, size = 0x12000, scoped, tag = 'internal scratch']
  %s0 = inlined_call_operand.hbm [shape: f32[8,256], index: 0, kind: input, shape index: {}]
  %s1 = inlined_call_operand.hbm [shape: f32[8,256], index: 1, kind: output, shape index: {}]
  %s2 = sld [smem:[#allocation0]]
  $region18: #{tpu_custom_call.1} parent=0
    _
  %s4 = ssub.s32 1, %s2
  %s5 = scalar_select 0, %s4, %s2
  $region1: #{tpu_custom_call.1} parent=0
    #allocation2 [shape = 'u8[8192]{0}', space=vmem, size = 0x2000, scoped, tag = 'input window, operand 0, single buffered']
    #allocation3 [shape = 's32[1]{0}', space=sflag, size = 0x4, scoped, tag = 'scoped memory for tpu_custom_call.1']
    #allocation4 [shape = 's32[1]{0}', space=sflag, size = 0x4, scoped, tag = 'scoped memory for tpu_custom_call.1']
    #allocation5 [shape = 'u8[8192]{0}', space=vmem, size = 0x2000, scoped, tag = 'output window, operand 0, single buffered']
    %6 = vsyncpa [#allocation3], 0
    %7 = vsyncpa [#allocation4], 0
    // Predicated region
    $region2: #{tpu_custom_call.1} parent=1 // pred_check
      _
    $region3: #{tpu_custom_call.1} parent=1 // pred_check_branch
      %9 = sbr.rel (0) target = $region5
    $region4: #{tpu_custom_call.1} parent=1 // pred_region
      %s11 = ssub.s32 256, 256
      %12 = vsyncadd [#allocation3], %s11
      %s14 = sshll.u32 [#allocation2], 4
      %s15 = int_to_ptr.vmem [resolvable:$true] %s14
      %17 = dma.hbm_to_vmem [thread:$0]  %s0, 256, %s15, [#allocation3]
    $region5: #{tpu_custom_call.1} parent=1 // pred_fallthru
      _
    // Predicated region
    $region6: #{tpu_custom_call.1} parent=1 // pred_check
      _
    $region7: #{tpu_custom_call.1} parent=1 // pred_check_branch
      %19 = sbr.rel (0) target = $region9
    $region8: #{tpu_custom_call.1} parent=1 // pred_region
      %20 = dma.done [#allocation3], 256
    $region9: #{tpu_custom_call.1} parent=1 // pred_fallthru
      _
    %v21 = vld [vmem:[#allocation2] sm:$0xff]
    %v22 = vld [vmem:[#allocation2 + $0x8] sm:$0xff]
    %v23 = vxor.u32 %v21, 2147483648
    %v24 = vxor.u32 %v22, 2147483648
    %v25 = vmul.f32 %v23, 1.442695
    %v26 = vpow.pop %v25
    %v27 = vmul.f32 %v24, 1.442695
    %v28 = vpow.pop %v27
    %v29 = vadd.f32 %v26, 1.0
    %v30 = vadd.f32 %v28, 1.0
    %v31 = vrcp.pop %v29
    %v32 = vmul.f32 1.0, %v31
    %v33 = vrcp.pop %v30
    %v34 = vmul.f32 1.0, %v33
    %v35 = vmul.f32 %v21, %v32
    %v36 = vmul.f32 %v22, %v34
    %37 = vst [vmem:[#allocation5] sm:$0xff] %v35
    %38 = vst [vmem:[#allocation5 + $0x8] sm:$0xff] %v36
    // Predicated region
    $region10: #{tpu_custom_call.1} parent=1 // pred_check
      _
    $region11: #{tpu_custom_call.1} parent=1 // pred_check_branch
      %40 = sbr.rel (0) target = $region13
    $region12: #{tpu_custom_call.1} parent=1 // pred_region
      %s42 = ssub.s32 256, 256
      %43 = vsyncadd [#allocation4], %s42
      %s45 = sshll.u32 [#allocation5], 4
      %s46 = int_to_ptr.vmem [resolvable:$true] %s45
      %48 = dma.vmem_to_hbm [thread:$0]  %s46, 256, %s1, [#allocation4]
    $region13: #{tpu_custom_call.1} parent=1 // pred_fallthru
      _
    // Predicated region
    $region14: #{tpu_custom_call.1} parent=1 // pred_check
      _
    $region15: #{tpu_custom_call.1} parent=1 // pred_check_branch
      %50 = sbr.rel (0) target = $region17
    $region16: #{tpu_custom_call.1} parent=1 // pred_region
      %51 = dma.done [#allocation4], 256
    $region17: #{tpu_custom_call.1} parent=1 // pred_fallthru
      _
    %52 = vsyncpa [#allocation3], 1
    %53 = vsyncpa [#allocation4], 1

</llo_original>
